<compile_context>
chip_gen: v6e
topology: v6e:2x2x1
jax: 0.10.0
libtpu: 0.0.40
codegen_flags: <defaults>
</compile_context>

<pallas_src>
import jax
import jax.numpy as jnp
from jax.experimental import pallas as pl
from jax.experimental.pallas import tpu as pltpu


def _concat_attention_kernel(
    img_ref,    # (TB, L, D_img)   image features (f32 or bf16)
    qfc_ref,    # (TB, 1, H)       q @ W_fc[:, D_img:].T + b_fc          (f32)
    qg_ref,     # (TB, 1, H)       q @ W_gate[:, D_img:].T + b_gate      (f32)
    wfc_ref,    # (D_img, H)       fc weight, image part, pre-transposed
    wg_ref,     # (D_img, H)       gate weight, image part, pre-transposed
    wlc_ref,    # (1, 1, H)        lc weight row                          (f32)
    blc_ref,    # (1, 1, 1)        lc bias                                (f32)
    out_ref,    # (TB, L, 1)       attention weights
):
    TB, L, D_img = img_ref.shape
    H = wfc_ref.shape[1]

    # Flatten (TB, L) -> TB*L rows so the MXU sees a tall LHS instead of L rows.
    img = img_ref[...].reshape(TB * L, D_img)

    y_fc = jnp.dot(img, wfc_ref[...], preferred_element_type=jnp.float32)
    y_gate = jnp.dot(img, wg_ref[...], preferred_element_type=jnp.float32)
    # Add the (hoisted) per-batch question projection + bias.
    y_fc = y_fc.reshape(TB, L, H) + qfc_ref[...]        # (TB, L, H) f32
    y_gate = y_gate.reshape(TB, L, H) + qg_ref[...]     # (TB, L, H) f32

    # GatedTanh.  sigmoid(x) == 0.5*(1 + tanh(0.5*x)): one EUP op per element
    # instead of exp + reciprocal.
    gated = jnp.tanh(y_fc) * (0.5 * (1.0 + jnp.tanh(0.5 * y_gate)))  # (TB, L, H)

    # lc: Linear(H, 1) as VPU multiply + lane reduction (keeps the MXU free,
    # avoids an N=1 matmul that would use a single MXU column).
    raw = jnp.sum(gated * wlc_ref[...], axis=-1, keepdims=True) + blc_ref[...]  # (TB, L, 1)

    # softmax over locations (dim=1 of the original (B, L, 1) tensor)
    m = jnp.max(raw, axis=1, keepdims=True)              # (TB, 1, 1)
    e = jnp.exp(raw - m)                                  # (TB, L, 1)
    denom = jnp.sum(e, axis=1, keepdims=True)             # (TB, 1, 1)
    attn = e * pl.reciprocal(denom, approx=True)          # (TB, L, 1)

    out_ref[...] = attn.astype(out_ref.dtype)


def concatenation_attention(image_feat, question_embedding, params, *,
                            compute_dtype=None, block_b=None):
    """image_feat: (B, L, D_img), question_embedding: (B, D_txt) -> (B, L, D_img)."""
    B, L, D_img = image_feat.shape
    D_txt = question_embedding.shape[1]
    H = params["b_fc"].shape[0]

    w_fc, b_fc = params["w_fc"], params["b_fc"]          # (H, D_img+D_txt), (H,)
    w_gate, b_gate = params["w_gate"], params["b_gate"]  # (H, D_img+D_txt), (H,)
    w_lc, b_lc = params["w_lc"], params["b_lc"]          # (1, H), (1,)

    # ---- glue (plain JAX) ---------------------------------------------------
    # (1) Hoisted question projection: one dense (B, D_txt) @ (D_txt, 2H) matmul
    #     instead of 2*B tiny M=1 matmuls inside the grid loop.  The bias terms
    #     b_fc / b_gate are folded in here as well.
    w_txt = jnp.concatenate([w_fc[:, D_img:], w_gate[:, D_img:]], axis=0)   # (2H, D_txt)
    b_txt = jnp.concatenate([b_fc, b_gate], axis=0)                         # (2H,)
    q_proj = question_embedding.astype(jnp.float32) @ w_txt.T.astype(jnp.float32) + b_txt
    q_fc = q_proj[:, :H].reshape(B, 1, H).astype(jnp.float32)
    q_gate = q_proj[:, H:].reshape(B, 1, H).astype(jnp.float32)

    # (2) Image-side weights, pre-transposed for (rows, D_img) @ (D_img, H).
    wfc_i = jnp.transpose(w_fc[:, :D_img])               # (D_img, H)
    wg_i = jnp.transpose(w_gate[:, :D_img])              # (D_img, H)
    wlc_row = w_lc.reshape(1, 1, H).astype(jnp.float32)  # (1, 1, H)
    blc = b_lc.reshape(1, 1, 1).astype(jnp.float32)      # (1, 1, 1)

    img_in = image_feat
    if compute_dtype is not None:
        # bf16 MXU path: halve weight/activation DMA bytes; epilogue stays f32.
        img_in = image_feat.astype(compute_dtype)
        wfc_i = wfc_i.astype(compute_dtype)
        wg_i = wg_i.astype(compute_dtype)

    # (3) Batch blocking: TB*L rows per grid step.
    if block_b is None:
        tb = max(1, min(B, pl.cdiv(256, max(L, 1))))     # target >= 256 MXU rows
        if B > 1 and B // tb < 2:                        # keep >= 2 steps for megacore
            tb = max(1, B // 2)
        while B % tb:                                    # TB must divide B
            tb -= 1
    else:
        tb = block_b
        assert B % tb == 0, "block_b must divide batch size"
    grid = (B // tb,)

    full2 = lambda b: (0, 0)
    full3 = lambda b: (0, 0, 0)

    attn = pl.pallas_call(
        _concat_attention_kernel,
        out_shape=jax.ShapeDtypeStruct((B, L, 1), image_feat.dtype),
        grid_spec=pltpu.PrefetchScalarGridSpec(
            num_scalar_prefetch=0,
            grid=grid,
            in_specs=[
                pl.BlockSpec((tb, L, D_img), lambda b: (b, 0, 0)),   # image_feat
                pl.BlockSpec((tb, 1, H), lambda b: (b, 0, 0)),       # q_fc
                pl.BlockSpec((tb, 1, H), lambda b: (b, 0, 0)),       # q_gate
                pl.BlockSpec((D_img, H), full2),                     # wfc_i
                pl.BlockSpec((D_img, H), full2),                     # wg_i
                pl.BlockSpec((1, 1, H), full3),                      # wlc_row
                pl.BlockSpec((1, 1, 1), full3),                      # blc
            ],
            out_specs=pl.BlockSpec((tb, L, 1), lambda b: (b, 0, 0)),
        ),
        compiler_params=pltpu.CompilerParams(dimension_semantics=("parallel",)),
    )(img_in, q_fc, q_gate, wfc_i, wg_i, wlc_row, blc)

    # expand_as(image_feat): a broadcast view, no extra HBM traffic in the kernel.
    return jnp.broadcast_to(attn, (B, L, D_img))


def _reference(image_feat, question_embedding, params):
    """Pure-JAX reference mirroring the PyTorch forward."""
    B, L, D_img = image_feat.shape
    q_exp = jnp.broadcast_to(question_embedding[:, None, :],
                             (B, L, question_embedding.shape[1]))
    x = jnp.concatenate([image_feat, q_exp], axis=2)
    y = jnp.tanh(x @ params["w_fc"].T + params["b_fc"]) * \
        jax.nn.sigmoid(x @ params["w_gate"].T + params["b_gate"])
    raw = y @ params["w_lc"].T + params["b_lc"]          # (B, L, 1)
    attn = jax.nn.softmax(raw, axis=1)
    return jnp.broadcast_to(attn, image_feat.shape)


if __name__ == "__main__":
    # Small shapes consistent with the module.
    B, L = 2, 8
    D_IMG, D_TXT, H = 16, 32, 32

    key = jax.random.PRNGKey(0)
    ks = jax.random.split(key, 8)

    image_feat = jax.random.normal(ks[0], (B, L, D_IMG), dtype=jnp.float32)
    question_embedding = jax.random.normal(ks[1], (B, D_TXT), dtype=jnp.float32)

    in_dim = D_IMG + D_TXT
    params = {
        "w_fc": 0.1 * jax.random.normal(ks[2], (H, in_dim), dtype=jnp.float32),
        "b_fc": 0.1 * jax.random.normal(ks[3], (H,), dtype=jnp.float32),
        "w_gate": 0.1 * jax.random.normal(ks[4], (H, in_dim), dtype=jnp.float32),
        "b_gate": 0.1 * jax.random.normal(ks[5], (H,), dtype=jnp.float32),
        "w_lc": 0.1 * jax.random.normal(ks[6], (1, H), dtype=jnp.float32),
        "b_lc": 0.1 * jax.random.normal(ks[7], (1,), dtype=jnp.float32),
    }

    ref = _reference(image_feat, question_embedding, params)

    # f32 path (tolerance loosened only for the approx softmax reciprocal).
    out = concatenation_attention(image_feat, question_embedding, params)
    out = jax.block_until_ready(out)
    assert out.shape == (B, L, D_IMG)
    assert jnp.allclose(out, ref, atol=2e-3, rtol=2e-3), "f32 path mismatch vs reference"

    # bf16 MXU path (image features + image-side weights in bf16).
    out_bf16 = concatenation_attention(image_feat, question_embedding, params,
                                       compute_dtype=jnp.bfloat16)
    out_bf16 = jax.block_until_ready(out_bf16)
    assert out_bf16.shape == (B, L, D_IMG)
    assert jnp.allclose(out_bf16, ref, atol=2e-2, rtol=2e-2), "bf16 path mismatch vs reference"

    print("KERNEL_OK")
</pallas_src>

<mosaic_0001>
module attributes {stable_mosaic.version = 11 : i64} {
  func.func @_concat_attention_kernel(%arg0: i32, %arg1: memref<1x8x16xf32, #tpu.memory_space<vmem>>, %arg2: memref<1x1x32xf32, #tpu.memory_space<vmem>>, %arg3: memref<1x1x32xf32, #tpu.memory_space<vmem>>, %arg4: memref<16x32xf32, #tpu.memory_space<vmem>>, %arg5: memref<16x32xf32, #tpu.memory_space<vmem>>, %arg6: memref<1x1x32xf32, #tpu.memory_space<vmem>>, %arg7: memref<1x1x1xf32, #tpu.memory_space<vmem>>, %arg8: memref<1x8x1xf32, #tpu.memory_space<vmem>>) attributes {dimension_semantics = [#tpu.dimension_semantics<parallel>], iteration_bounds = array<i64: 2>, scalar_prefetch = 0 : i64, scratch_operands = 0 : i64, tpu.core_type = #tpu.core_type<tc>, window_params = [{transform_indices = @transform_0, window_bounds = array<i64: 1, 8, 16>}, {transform_indices = @transform_1, window_bounds = array<i64: 1, 1, 32>}, {transform_indices = @transform_2, window_bounds = array<i64: 1, 1, 32>}, {pipeline_mode = #tpu.pipeline_mode<synchronous>, transform_indices = @transform_3, window_bounds = array<i64: 16, 32>}, {pipeline_mode = #tpu.pipeline_mode<synchronous>, transform_indices = @transform_4, window_bounds = array<i64: 16, 32>}, {pipeline_mode = #tpu.pipeline_mode<synchronous>, transform_indices = @transform_5, window_bounds = array<i64: 1, 1, 32>}, {pipeline_mode = #tpu.pipeline_mode<synchronous>, transform_indices = @transform_6, window_bounds = array<i64: 1, 1, 1>}, {transform_indices = @transform_7, window_bounds = array<i64: 1, 8, 1>}]} {
    %c0 = arith.constant 0 : index
    %c0_0 = arith.constant 0 : index
    %c0_1 = arith.constant 0 : index
    %0 = vector.load %arg1[%c0, %c0_0, %c0_1] : memref<1x8x16xf32, #tpu.memory_space<vmem>>, vector<1x8x16xf32>
    %1 = vector.shape_cast %0 : vector<1x8x16xf32> to vector<8x16xf32>
    %c0_2 = arith.constant 0 : index
    %c0_3 = arith.constant 0 : index
    %2 = vector.load %arg4[%c0_2, %c0_3] : memref<16x32xf32, #tpu.memory_space<vmem>>, vector<16x32xf32>
    %cst = arith.constant dense<0.000000e+00> : vector<8x32xf32>
    %3 = tpu.matmul %1, %2, %cst {dimension_numbers = #tpu.dot_dimension_numbers<[1], [0], [0], [1], [0, 0, 1, 1], [], []>} : vector<8x16xf32>, vector<16x32xf32>, vector<8x32xf32> -> vector<8x32xf32>
    %c0_4 = arith.constant 0 : index
    %c0_5 = arith.constant 0 : index
    %4 = vector.load %arg5[%c0_4, %c0_5] : memref<16x32xf32, #tpu.memory_space<vmem>>, vector<16x32xf32>
    %cst_6 = arith.constant dense<0.000000e+00> : vector<8x32xf32>
    %5 = tpu.matmul %1, %4, %cst_6 {dimension_numbers = #tpu.dot_dimension_numbers<[1], [0], [0], [1], [0, 0, 1, 1], [], []>} : vector<8x16xf32>, vector<16x32xf32>, vector<8x32xf32> -> vector<8x32xf32>
    %6 = vector.shape_cast %3 : vector<8x32xf32> to vector<1x8x32xf32>
    %c0_7 = arith.constant 0 : index
    %c0_8 = arith.constant 0 : index
    %c0_9 = arith.constant 0 : index
    %7 = vector.load %arg2[%c0_7, %c0_8, %c0_9] : memref<1x1x32xf32, #tpu.memory_space<vmem>>, vector<1x1x32xf32>
    %8 = vector.broadcast %7 : vector<1x1x32xf32> to vector<1x8x32xf32>
    %9 = arith.addf %6, %8 : vector<1x8x32xf32>
    %10 = vector.shape_cast %5 : vector<8x32xf32> to vector<1x8x32xf32>
    %c0_10 = arith.constant 0 : index
    %c0_11 = arith.constant 0 : index
    %c0_12 = arith.constant 0 : index
    %11 = vector.load %arg3[%c0_10, %c0_11, %c0_12] : memref<1x1x32xf32, #tpu.memory_space<vmem>>, vector<1x1x32xf32>
    %12 = vector.broadcast %11 : vector<1x1x32xf32> to vector<1x8x32xf32>
    %13 = arith.addf %10, %12 : vector<1x8x32xf32>
    %14 = math.tanh %9 : vector<1x8x32xf32>
    %cst_13 = arith.constant 5.000000e-01 : f32
    %15 = vector.broadcast %cst_13 : f32 to vector<1x8x32xf32>
    %16 = arith.mulf %15, %13 : vector<1x8x32xf32>
    %17 = math.tanh %16 : vector<1x8x32xf32>
    %cst_14 = arith.constant 1.000000e+00 : f32
    %18 = vector.broadcast %cst_14 : f32 to vector<1x8x32xf32>
    %19 = arith.addf %18, %17 : vector<1x8x32xf32>
    %cst_15 = arith.constant 5.000000e-01 : f32
    %20 = vector.broadcast %cst_15 : f32 to vector<1x8x32xf32>
    %21 = arith.mulf %20, %19 : vector<1x8x32xf32>
    %22 = arith.mulf %14, %21 : vector<1x8x32xf32>
    %c0_16 = arith.constant 0 : index
    %c0_17 = arith.constant 0 : index
    %c0_18 = arith.constant 0 : index
    %23 = vector.load %arg6[%c0_16, %c0_17, %c0_18] : memref<1x1x32xf32, #tpu.memory_space<vmem>>, vector<1x1x32xf32>
    %24 = vector.broadcast %23 : vector<1x1x32xf32> to vector<1x8x32xf32>
    %25 = arith.mulf %22, %24 : vector<1x8x32xf32>
    %cst_19 = arith.constant dense<0.000000e+00> : vector<1x8xf32>
    %26 = vector.multi_reduction <add>, %25, %cst_19 [2] : vector<1x8x32xf32> to vector<1x8xf32>
    %27 = vector.shape_cast %26 : vector<1x8xf32> to vector<1x8x1xf32>
    %c0_20 = arith.constant 0 : index
    %c0_21 = arith.constant 0 : index
    %c0_22 = arith.constant 0 : index
    %28 = vector.load %arg7[%c0_20, %c0_21, %c0_22] : memref<1x1x1xf32, #tpu.memory_space<vmem>>, vector<1x1x1xf32>
    %29 = vector.broadcast %28 : vector<1x1x1xf32> to vector<1x8x1xf32>
    %30 = arith.addf %27, %29 : vector<1x8x1xf32>
    %cst_23 = arith.constant dense<0xFF800000> : vector<1x1xf32>
    %31 = vector.multi_reduction <maximumf>, %30, %cst_23 [1] : vector<1x8x1xf32> to vector<1x1xf32>
    %32 = vector.shape_cast %31 : vector<1x1xf32> to vector<1x1x1xf32>
    %33 = vector.broadcast %32 : vector<1x1x1xf32> to vector<1x8x1xf32>
    %34 = arith.subf %30, %33 : vector<1x8x1xf32>
    %35 = math.exp %34 : vector<1x8x1xf32>
    %cst_24 = arith.constant dense<0.000000e+00> : vector<1x1xf32>
    %36 = vector.multi_reduction <add>, %35, %cst_24 [1] : vector<1x8x1xf32> to vector<1x1xf32>
    %37 = vector.shape_cast %36 : vector<1x1xf32> to vector<1x1x1xf32>
    %38 = tpu.reciprocal %37 {approx = true} : vector<1x1x1xf32> -> vector<1x1x1xf32>
    %39 = vector.broadcast %38 : vector<1x1x1xf32> to vector<1x8x1xf32>
    %40 = arith.mulf %35, %39 : vector<1x8x1xf32>
    %c0_25 = arith.constant 0 : index
    %c0_26 = arith.constant 0 : index
    %c0_27 = arith.constant 0 : index
    %41 = vector.load %arg8[%c0_25, %c0_26, %c0_27] : memref<1x8x1xf32, #tpu.memory_space<vmem>>, vector<1x8x1xf32>
    tpu.vector_store %arg8[%c0_25, %c0_26, %c0_27], %40 {strides = array<i32>} : memref<1x8x1xf32, #tpu.memory_space<vmem>>, vector<1x8x1xf32>,
    return
  }
  func.func @transform_0(%arg0: i32) -> (i32, i32, i32) {
    %c0_i32 = arith.constant 0 : i32
    %c0_i32_0 = arith.constant 0 : i32
    %c0_i32_1 = arith.constant 0 : i32
    return %arg0, %c0_i32, %c0_i32_0 : i32, i32, i32
  }
  func.func @transform_1(%arg0: i32) -> (i32, i32, i32) {
    %c0_i32 = arith.constant 0 : i32
    %c0_i32_0 = arith.constant 0 : i32
    %c0_i32_1 = arith.constant 0 : i32
    return %arg0, %c0_i32, %c0_i32_0 : i32, i32, i32
  }
  func.func @transform_2(%arg0: i32) -> (i32, i32, i32) {
    %c0_i32 = arith.constant 0 : i32
    %c0_i32_0 = arith.constant 0 : i32
    %c0_i32_1 = arith.constant 0 : i32
    return %arg0, %c0_i32, %c0_i32_0 : i32, i32, i32
  }
  func.func @transform_3(%arg0: i32) -> (i32, i32) {
    %c0_i32 = arith.constant 0 : i32
    %c0_i32_0 = arith.constant 0 : i32
    %c0_i32_1 = arith.constant 0 : i32
    return %c0_i32, %c0_i32_0 : i32, i32
  }
  func.func @transform_4(%arg0: i32) -> (i32, i32) {
    %c0_i32 = arith.constant 0 : i32
    %c0_i32_0 = arith.constant 0 : i32
    %c0_i32_1 = arith.constant 0 : i32
    return %c0_i32, %c0_i32_0 : i32, i32
  }
  func.func @transform_5(%arg0: i32) -> (i32, i32, i32) {
    %c0_i32 = arith.constant 0 : i32
    %c0_i32_0 = arith.constant 0 : i32
    %c0_i32_1 = arith.constant 0 : i32
    %c0_i32_2 = arith.constant 0 : i32
    return %c0_i32, %c0_i32_0, %c0_i32_1 : i32, i32, i32
  }
  func.func @transform_6(%arg0: i32) -> (i32, i32, i32) {
    %c0_i32 = arith.constant 0 : i32
    %c0_i32_0 = arith.constant 0 : i32
    %c0_i32_1 = arith.constant 0 : i32
    %c0_i32_2 = arith.constant 0 : i32
    return %c0_i32, %c0_i32_0, %c0_i32_1 : i32, i32, i32
  }
  func.func @transform_7(%arg0: i32) -> (i32, i32, i32) {
    %c0_i32 = arith.constant 0 : i32
    %c0_i32_0 = arith.constant 0 : i32
    %c0_i32_1 = arith.constant 0 : i32
    return %arg0, %c0_i32, %c0_i32_0 : i32, i32, i32
  }
}

</mosaic_0001>

<llo_original>
// kernel: tpu_custom_call.1
$region0: #{tpu_custom_call.1}
  #allocation0 [shape = 'u32[]', space=smem, size = 0x4, offset = 0x4, fixed_abs, tag = 'smem constant byte address 0x4 - core index']
  #allocation1 [shape = 'u32[144,128]{1,0:T(1,128)}', space=vmem, size = 0x12000, scoped, tag = 'internal scratch']
  #allocation2 [shape = 'f32[1,1,1]{2,1,0:T(1,128)S(1)}', space=vmem, size = 0x200, scoped, tag = 'scoped memory for tpu_custom_call.1']
  %s0 = inlined_call_operand.hbm [shape: f32[2,8,16], index: 0, kind: input, shape index: {}]
  %s1 = inlined_call_operand.vmem [shape: f32[2,1,32], index: 1, kind: input, shape index: {}]
  %s2 = inlined_call_operand.vmem [shape: f32[2,1,32], index: 2, kind: input, shape index: {}]
  %s3 = inlined_call_operand.hbm [shape: f32[16,32], index: 3, kind: input, shape index: {}]
  %s4 = inlined_call_operand.hbm [shape: f32[16,32], index: 4, kind: input, shape index: {}]
  %s5 = inlined_call_operand.vmem [shape: f32[1,1,32], index: 5, kind: input, shape index: {}]
  %s6 = inlined_call_operand.<no memory space> [shape: f32[1,1,1], index: 6, kind: input, shape index: {}]
  %s7 = inlined_call_operand.vmem [shape: f32[2,8,1], index: 7, kind: output, shape index: {}]
  %s8 = sld [smem:[#allocation0]]
  $region73: #{tpu_custom_call.1} parent=0
    _
  %s10 = ssub.s32 1, %s8
  %s11 = scalar_select 0, %s10, %s8
  %v12 = vstv %s6
  %13 = vst [vmem:[#allocation2] sm:$0x1] %v12
  $region1: #{tpu_custom_call.1} parent=0
    #allocation3 [shape = 'u8[8192]{0}', space=vmem, size = 0x2000, scoped, tag = 'input window, operand 0']
    #allocation4 [shape = 's32[2]{0}', space=sflag, size = 0x8, scoped, tag = 'scoped memory for tpu_custom_call.1']
    #allocation5 [shape = 'u8[8192]{0}', space=vmem, size = 0x2000, scoped, tag = 'input window, operand 3, single buffered']
    #allocation6 [shape = 's32[1]{0}', space=sflag, size = 0x4, scoped, tag = 'scoped memory for tpu_custom_call.1']
    #allocation7 [shape = 'u8[8192]{0}', space=vmem, size = 0x2000, scoped, tag = 'input window, operand 4, single buffered']
    %14 = vsyncpa [#allocation4], 0
    %s15 = scalar_lea.sflag [#allocation4], 1
    %16 = vsyncpa %s15, 0
    %17 = vsyncpa [#allocation6], 0
    loop: start=0, step=1, limit=4
    $region2: #{tpu_custom_call.1} parent=1 // loop_pre_header
      _
    $region3: #{tpu_custom_call.1} parent=1 // loop_header
      %s19 = sphi 0, %s23
      %p20 = scmp.ge.s32.totalorder %s19, 4
      %s29 = sphi 0, %s31
      %s32 = sphi 0, %s29
      %s33 = sphi 0, %s32
      %s49 = sphi 0, %s33
      %s55 = sphi 0, %s57
      %s58 = sphi 0, %s55
      %s59 = sphi 0, %s58
      %s75 = sphi 0, %s59
      %s81 = sphi 0, %s83
      %s84 = sphi 0, %s81
      %s85 = sphi 0, %s84
      %s101 = sphi 0, %s85
      %s105 = sphi 0, %s105
      %s107 = sphi 0, %s105
      %s108 = sphi 0, %s107
      %s122 = sphi 0, %s108
      %s126 = sphi 0, %s126
      %s128 = sphi 0, %s126
      %s129 = sphi 0, %s128
      %s143 = sphi 0, %s129
      %s147 = sphi 0, %s147
      %s149 = sphi 0, %s147
      %s150 = sphi 0, %s149
      %s164 = sphi 0, %s150
      %s168 = sphi 0, %s168
      %s170 = sphi 0, %s168
      %s171 = sphi 0, %s170
      %s185 = sphi 0, %s171
      %s191 = sphi 0, %s193
      %s194 = sphi 0, %s191
      %s195 = sphi 0, %s194
      %s211 = sphi 0, %s195
    $region4: #{tpu_custom_call.1} parent=1 // loop_header_branch
      %22 = sbr.rel (%p20) target = $region8
    $region5: #{tpu_custom_call.1} parent=1 // loop_body
      %s24 = ssub.s32 %s19, 1
      %s25 = ssub.s32 %s19, 2
      %s26 = sadd.s32 %s19, 1
      %s27 = ssub.s32 %s19, %s26
      %p28 = scmp.eq.s32.totalorder %s27, 0
      %s30 = sadd.s32 %s29, 1
      %s31 = scalar_select %p28, %s29, %s30
      %p34 = pneg %p28
      %p35 = scmp.eq.s32.totalorder %s19, 1
      %p36 = por %p34, %p35
      %p37 = scmp.ne.s32.totalorder %s29, %s32
      %p38 = scmp.eq.s32.totalorder %s19, 0
      %p39 = por %p37, %p38
      %p40 = scmp.ne.s32.totalorder %s29, %s32
      %p41 = scmp.eq.s32.totalorder %s24, 1
      %p42 = por %p40, %p41
      %p43 = scmp.ne.s32.totalorder %s32, %s33
      %p44 = scmp.eq.s32.totalorder %s24, 0
      %p45 = por %p43, %p44
      %p46 = scmp.ne.s32.totalorder %s32, %s33
      %p47 = scmp.eq.s32.totalorder %s25, 1
      %p48 = por %p46, %p47
      %p50 = scmp.ne.s32.totalorder %s33, %s49
      %p51 = scmp.eq.s32.totalorder %s25, 0
      %p52 = por %p50, %p51
      %s53 = ssub.s32 %s19, %s26
      %p54 = scmp.eq.s32.totalorder %s53, 0
      %s56 = sadd.s32 %s55, 1
      %s57 = scalar_select %p54, %s55, %s56
      %p60 = pneg %p54
      %p61 = scmp.eq.s32.totalorder %s19, 1
      %p62 = por %p60, %p61
      %p63 = scmp.ne.s32.totalorder %s55, %s58
      %p64 = scmp.eq.s32.totalorder %s19, 0
      %p65 = por %p63, %p64
      %p66 = scmp.ne.s32.totalorder %s55, %s58
      %p67 = scmp.eq.s32.totalorder %s24, 1
      %p68 = por %p66, %p67
      %p69 = scmp.ne.s32.totalorder %s58, %s59
      %p70 = scmp.eq.s32.totalorder %s24, 0
      %p71 = por %p69, %p70
      %p72 = scmp.ne.s32.totalorder %s58, %s59
      %p73 = scmp.eq.s32.totalorder %s25, 1
      %p74 = por %p72, %p73
      %p76 = scmp.ne.s32.totalorder %s59, %s75
      %p77 = scmp.eq.s32.totalorder %s25, 0
      %p78 = por %p76, %p77
      %s79 = ssub.s32 %s19, %s26
      %p80 = scmp.eq.s32.totalorder %s79, 0
      %s82 = sadd.s32 %s81, 1
      %s83 = scalar_select %p80, %s81, %s82
      %p86 = pneg %p80
      %p87 = scmp.eq.s32.totalorder %s19, 1
      %p88 = por %p86, %p87
      %p89 = scmp.ne.s32.totalorder %s81, %s84
      %p90 = scmp.eq.s32.totalorder %s19, 0
      %p91 = por %p89, %p90
      %p92 = scmp.ne.s32.totalorder %s81, %s84
      %p93 = scmp.eq.s32.totalorder %s24, 1
      %p94 = por %p92, %p93
      %p95 = scmp.ne.s32.totalorder %s84, %s85
      %p96 = scmp.eq.s32.totalorder %s24, 0
      %p97 = por %p95, %p96
      %p98 = scmp.ne.s32.totalorder %s84, %s85
      %p99 = scmp.eq.s32.totalorder %s25, 1
      %p100 = por %p98, %p99
      %p102 = scmp.ne.s32.totalorder %s85, %s101
      %p103 = scmp.eq.s32.totalorder %s25, 0
      %p104 = por %p102, %p103
      %s106 = sadd.s32 %s105, 1
      %p109 = scmp.eq.s32.totalorder %s19, 1
      %p110 = scmp.ne.s32.totalorder %s105, %s107
      %p111 = scmp.eq.s32.totalorder %s19, 0
      %p112 = por %p110, %p111
      %p113 = scmp.ne.s32.totalorder %s105, %s107
      %p114 = scmp.eq.s32.totalorder %s24, 1
      %p115 = por %p113, %p114
      %p116 = scmp.ne.s32.totalorder %s107, %s108
      %p117 = scmp.eq.s32.totalorder %s24, 0
      %p118 = por %p116, %p117
      %p119 = scmp.ne.s32.totalorder %s107, %s108
      %p120 = scmp.eq.s32.totalorder %s25, 1
      %p121 = por %p119, %p120
      %p123 = scmp.ne.s32.totalorder %s108, %s122
      %p124 = scmp.eq.s32.totalorder %s25, 0
      %p125 = por %p123, %p124
      %s127 = sadd.s32 %s126, 1
      %p130 = scmp.eq.s32.totalorder %s19, 1
      %p131 = scmp.ne.s32.totalorder %s126, %s128
      %p132 = scmp.eq.s32.totalorder %s19, 0
      %p133 = por %p131, %p132
      %p134 = scmp.ne.s32.totalorder %s126, %s128
      %p135 = scmp.eq.s32.totalorder %s24, 1
      %p136 = por %p134, %p135
      %p137 = scmp.ne.s32.totalorder %s128, %s129
      %p138 = scmp.eq.s32.totalorder %s24, 0
      %p139 = por %p137, %p138
      %p140 = scmp.ne.s32.totalorder %s128, %s129
      %p141 = scmp.eq.s32.totalorder %s25, 1
      %p142 = por %p140, %p141
      %p144 = scmp.ne.s32.totalorder %s129, %s143
      %p145 = scmp.eq.s32.totalorder %s25, 0
      %p146 = por %p144, %p145
      %s148 = sadd.s32 %s147, 1
      %p151 = scmp.eq.s32.totalorder %s19, 1
      %p152 = scmp.ne.s32.totalorder %s147, %s149
      %p153 = scmp.eq.s32.totalorder %s19, 0
      %p154 = por %p152, %p153
      %p155 = scmp.ne.s32.totalorder %s147, %s149
      %p156 = scmp.eq.s32.totalorder %s24, 1
      %p157 = por %p155, %p156
      %p158 = scmp.ne.s32.totalorder %s149, %s150
      %p159 = scmp.eq.s32.totalorder %s24, 0
      %p160 = por %p158, %p159
      %p161 = scmp.ne.s32.totalorder %s149, %s150
      %p162 = scmp.eq.s32.totalorder %s25, 1
      %p163 = por %p161, %p162
      %p165 = scmp.ne.s32.totalorder %s150, %s164
      %p166 = scmp.eq.s32.totalorder %s25, 0
      %p167 = por %p165, %p166
      %s169 = sadd.s32 %s168, 1
      %p172 = scmp.eq.s32.totalorder %s19, 1
      %p173 = scmp.ne.s32.totalorder %s168, %s170
      %p174 = scmp.eq.s32.totalorder %s19, 0
      %p175 = por %p173, %p174
      %p176 = scmp.ne.s32.totalorder %s168, %s170
      %p177 = scmp.eq.s32.totalorder %s24, 1
      %p178 = por %p176, %p177
      %p179 = scmp.ne.s32.totalorder %s170, %s171
      %p180 = scmp.eq.s32.totalorder %s24, 0
      %p181 = por %p179, %p180
      %p182 = scmp.ne.s32.totalorder %s170, %s171
      %p183 = scmp.eq.s32.totalorder %s25, 1
      %p184 = por %p182, %p183
      %p186 = scmp.ne.s32.totalorder %s171, %s185
      %p187 = scmp.eq.s32.totalorder %s25, 0
      %p188 = por %p186, %p187
      %s189 = ssub.s32 %s19, %s26
      %p190 = scmp.eq.s32.totalorder %s189, 0
      %s192 = sadd.s32 %s191, 1
      %s193 = scalar_select %p190, %s191, %s192
      %p196 = pneg %p190
      %p197 = scmp.eq.s32.totalorder %s19, 1
      %p198 = por %p196, %p197
      %p199 = scmp.ne.s32.totalorder %s191, %s194
      %p200 = scmp.eq.s32.totalorder %s19, 0
      %p201 = por %p199, %p200
      %p202 = scmp.ne.s32.totalorder %s191, %s194
      %p203 = scmp.eq.s32.totalorder %s24, 1
      %p204 = por %p202, %p203
      %p205 = scmp.ne.s32.totalorder %s194, %s195
      %p206 = scmp.eq.s32.totalorder %s24, 0
      %p207 = por %p205, %p206
      %p208 = scmp.ne.s32.totalorder %s194, %s195
      %p209 = scmp.eq.s32.totalorder %s25, 1
      %p210 = por %p208, %p209
      %p212 = scmp.ne.s32.totalorder %s195, %s211
      %p213 = scmp.eq.s32.totalorder %s25, 0
      %p214 = por %p212, %p213
      %p215 = scmp.le.s32.totalorder 1, %s19
      %p216 = scmp.lt.s32.totalorder %s19, 3
      %p217 = pnand %p215, %p216
      %p218 = pneg %p217
      // Predicated region
      $region9: #{tpu_custom_call.1} parent=5 // pred_check
        _
      $region10: #{tpu_custom_call.1} parent=5 // pred_check_branch
        %220 = sbr.rel (%p217) target = $region12
      $region11: #{tpu_custom_call.1} parent=5 // pred_region
        %s221 = ssub.s32 %s19, 1
        // Predicated region
        $region13: #{tpu_custom_call.1} parent=11 // pred_check
          %p222 = pneg %p118
        $region14: #{tpu_custom_call.1} parent=11 // pred_check_branch
          %224 = sbr.rel (%p222) target = $region16
        $region15: #{tpu_custom_call.1} parent=11 // pred_region
          %s226 = ssub.s32 256, 256
          %227 = vsyncadd [#allocation6], %s226
          %s228 = sshll.u32 [#allocation5], 4
          %s229 = int_to_ptr.vmem [resolvable:$true] %s228
          %234 = dma.hbm_to_vmem [thread:$0]  %s3, 256, %s229, [#allocation6], 128, 128, 8
        $region16: #{tpu_custom_call.1} parent=11 // pred_fallthru
          _
        // Predicated region
        $region17: #{tpu_custom_call.1} parent=11 // pred_check
          %p235 = pneg %p139
        $region18: #{tpu_custom_call.1} parent=11 // pred_check_branch
          %237 = sbr.rel (%p235) target = $region20
        $region19: #{tpu_custom_call.1} parent=11 // pred_region
          %s239 = ssub.s32 256, 256
          %240 = vsyncadd [#allocation6], %s239
          %s241 = sshll.u32 [#allocation7], 4
          %s242 = int_to_ptr.vmem [resolvable:$true] %s241
          %247 = dma.hbm_to_vmem [thread:$0]  %s4, 256, %s242, [#allocation6], 128, 128, 8
        $region20: #{tpu_custom_call.1} parent=11 // pred_fallthru
          _
        // Predicated region
        $region21: #{tpu_custom_call.1} parent=11 // pred_check
          %p248 = pneg %p160
        $region22: #{tpu_custom_call.1} parent=11 // pred_check_branch
          %250 = sbr.rel (%p248) target = $region24
        $region23: #{tpu_custom_call.1} parent=11 // pred_region
          _
        $region24: #{tpu_custom_call.1} parent=11 // pred_fallthru
          _
        // Predicated region
        $region25: #{tpu_custom_call.1} parent=11 // pred_check
          %p251 = pneg %p181
        $region26: #{tpu_custom_call.1} parent=11 // pred_check_branch
          %253 = sbr.rel (%p251) target = $region28
        $region27: #{tpu_custom_call.1} parent=11 // pred_region
          _
        $region28: #{tpu_custom_call.1} parent=11 // pred_fallthru
          _
      $region12: #{tpu_custom_call.1} parent=5 // pred_fallthru
        _
      %p254 = scmp.lt.s32.totalorder %s19, 2
      // Predicated region
      $region29: #{tpu_custom_call.1} parent=5 // pred_check
        %p255 = pneg %p254
      $region30: #{tpu_custom_call.1} parent=5 // pred_check_branch
        %257 = sbr.rel (%p255) target = $region32
      $region31: #{tpu_custom_call.1} parent=5 // pred_region
        // Predicated region
        $region33: #{tpu_custom_call.1} parent=31 // pred_check
          %p258 = pneg %p39
        $region34: #{tpu_custom_call.1} parent=31 // pred_check_branch
          %260 = sbr.rel (%p258) target = $region36
        $region35: #{tpu_custom_call.1} parent=31 // pred_region
          %s261 = sand.u32 %s29, 1
          %s262 = scalar_lea.sflag [#allocation4], %s261
          %s263 = sand.u32 %s29, 1
          %s264 = smul.addr %s263, 8
          %s265 = scalar_lea.vmem [#allocation3], %s264
          %s267 = ssub.s32 128, 128
          %268 = vsyncadd %s262, %s267
          %s269 = smul.addr %s19, 128
          %s270 = scalar_lea.hbm %s0, %s269
          %s272 = sshll.u32 %s265, 4
          %s273 = int_to_ptr.vmem [resolvable:$true] %s272
          %275 = dma.hbm_to_vmem [thread:$0]  %s270, 128, %s273, %s262
        $region36: #{tpu_custom_call.1} parent=31 // pred_fallthru
          _
        // Predicated region
        $region37: #{tpu_custom_call.1} parent=31 // pred_check
          %p276 = pneg %p65
        $region38: #{tpu_custom_call.1} parent=31 // pred_check_branch
          %278 = sbr.rel (%p276) target = $region40
        $region39: #{tpu_custom_call.1} parent=31 // pred_region
          %p279 = scmp.lt.s32.totalorder %s19, 1
          %s280 = scalar_select %p279, %s19, 1
          %s281 = scalar_lea.vmem %s1, %s280
        $region40: #{tpu_custom_call.1} parent=31 // pred_fallthru
          _
        // Predicated region
        $region41: #{tpu_custom_call.1} parent=31 // pred_check
          %p282 = pneg %p91
        $region42: #{tpu_custom_call.1} parent=31 // pred_check_branch
          %284 = sbr.rel (%p282) target = $region44
        $region43: #{tpu_custom_call.1} parent=31 // pred_region
          %p285 = scmp.lt.s32.totalorder %s19, 1
          %s286 = scalar_select %p285, %s19, 1
          %s287 = scalar_lea.vmem %s2, %s286
        $region44: #{tpu_custom_call.1} parent=31 // pred_fallthru
          _
      $region32: #{tpu_custom_call.1} parent=5 // pred_fallthru
        _
      %p288 = scmp.le.s32.totalorder 1, %s19
      %p289 = scmp.lt.s32.totalorder %s19, 3
      %p290 = pnand %p288, %p289
      %p291 = pneg %p290
      // Predicated region
      $region45: #{tpu_custom_call.1} parent=5 // pred_check
        _
      $region46: #{tpu_custom_call.1} parent=5 // pred_check_branch
        %293 = sbr.rel (%p290) target = $region48
      $region47: #{tpu_custom_call.1} parent=5 // pred_region
        %s294 = ssub.s32 %s19, 1
        %s295 = sand.u32 %s32, 1
        %s296 = scalar_lea.sflag [#allocation4], %s295
        %s297 = sand.u32 %s32, 1
        %s298 = smul.addr %s297, 8
        %s299 = scalar_lea.vmem [#allocation3], %s298
        // Predicated region
        $region49: #{tpu_custom_call.1} parent=47 // pred_check
          %p300 = pneg %p45
        $region50: #{tpu_custom_call.1} parent=47 // pred_check_branch
          %302 = sbr.rel (%p300) target = $region52
        $region51: #{tpu_custom_call.1} parent=47 // pred_region
          %303 = dma.done %s296, 128
        $region52: #{tpu_custom_call.1} parent=47 // pred_fallthru
          _
        // Predicated region
        $region53: #{tpu_custom_call.1} parent=47 // pred_check
          %p304 = pneg %p118
        $region54: #{tpu_custom_call.1} parent=47 // pred_check_branch
          %306 = sbr.rel (%p304) target = $region56
        $region55: #{tpu_custom_call.1} parent=47 // pred_region
          %307 = dma.done [#allocation6], 256
        $region56: #{tpu_custom_call.1} parent=47 // pred_fallthru
          _
        // Predicated region
        $region57: #{tpu_custom_call.1} parent=47 // pred_check
          %p308 = pneg %p139
        $region58: #{tpu_custom_call.1} parent=47 // pred_check_branch
          %310 = sbr.rel (%p308) target = $region60
        $region59: #{tpu_custom_call.1} parent=47 // pred_region
          %311 = dma.done [#allocation6], 256
        $region60: #{tpu_custom_call.1} parent=47 // pred_fallthru
          _
        %s312 = sand.u32 %s32, 1
        %s313 = scalar_lea.sflag [#allocation4], %s312
        %s314 = sand.u32 %s32, 1
        %s315 = smul.addr %s314, 8
        %s316 = scalar_lea.vmem [#allocation3], %s315
        %p317 = pneg %p45
        %p318 = pneg %p42
        %p319 = scmp.lt.s32.totalorder %s24, 1
        %s320 = scalar_select %p319, %s24, 1
        %s321 = scalar_lea.vmem %s1, %s320
        %p322 = pneg %p71
        %p323 = pneg %p68
        %p324 = scmp.lt.s32.totalorder %s24, 1
        %s325 = scalar_select %p324, %s24, 1
        %s326 = scalar_lea.vmem %s2, %s325
        %p327 = pneg %p97
        %p328 = pneg %p94
        %p329 = pneg %p118
        %p330 = pneg %p115
        %p331 = pneg %p139
        %p332 = pneg %p136
        %p333 = pneg %p160
        %p334 = pneg %p157
        %p335 = pneg %p181
        %p336 = pneg %p178
        %p337 = pneg %p207
        %p338 = pneg %p204
        %p339 = scmp.lt.s32.totalorder %s24, 1
        %s340 = scalar_select %p339, %s24, 1
        %s341 = smul.addr %s340, 8
        %s342 = scalar_lea.vmem %s7, %s341
        %p343 = scmp.lt.s32.totalorder %s24, 1
        %s344 = scalar_select %p343, %s24, 1
        %s345 = scalar_lea.vmem %s1, %s344
        %p346 = scmp.lt.s32.totalorder %s24, 1
        %s347 = scalar_select %p346, %s24, 1
        %s348 = scalar_lea.vmem %s2, %s347
        %p349 = scmp.lt.s32.totalorder %s24, 1
        %s350 = scalar_select %p349, %s24, 1
        %s351 = smul.addr %s350, 8
        %s352 = scalar_lea.vmem %s7, %s351
        %v353 = vld [vmem:[%s299] sm:$0xff]
        %v354 = vld [vmem:[#allocation5] sm:$0xff]
        %v355 = vld [vmem:[#allocation5 + $0x8] sm:$0xff]
        %vm356 = vcmask 130048
        %v358 = vsel %vm356, %v353, 0
        %360 = vmatprep.subr.mxu0 0.0
        %361 = vmatpush1.msra.mxu0 0.0
        %362 = vmatprep.subr.mxu0 0.0
        %363 = vmatpush1.msra.mxu0 0.0
        %364 = vmatprep.subr.mxu0 0.0
        %365 = vmatpush1.msra.mxu0 0.0
        %366 = vmatprep.subr.mxu0 0.0
        %367 = vmatpush1.msra.mxu0 0.0
        %368 = vmatprep.subr.mxu0 0.0
        %369 = vmatpush1.msra.mxu0 0.0
        %370 = vmatprep.subr.mxu0 0.0
        %371 = vmatpush1.msra.mxu0 0.0
        %372 = vmatprep.subr.mxu0 0.0
        %373 = vmatpush1.msra.mxu0 0.0
        %374 = vmatprep.subr.mxu0 0.0
        %375 = vmatpush1.msra.mxu0 0.0
        %376 = vmatprep.subr.mxu0 0.0
        %377 = vmatpush1.msra.mxu0 0.0
        %378 = vmatprep.subr.mxu0 0.0
        %379 = vmatpush1.msra.mxu0 0.0
        %380 = vmatprep.subr.mxu0 0.0
        %381 = vmatpush1.msra.mxu0 0.0
        %382 = vmatprep.subr.mxu0 0.0
        %383 = vmatpush1.msra.mxu0 0.0
        %384 = vmatprep.subr.mxu0 0.0
        %385 = vmatpush1.msra.mxu0 0.0
        %386 = vmatprep.subr.mxu0 0.0
        %387 = vmatpush1.msra.mxu0 0.0
        %388 = vmatprep.subr.mxu0 0.0
        %389 = vmatpush1.msra.mxu0 %v355
        %390 = vmatprep.subr.mxu0 0.0
        %391 = vmatpush1.msra.mxu0 %v354
        %392 = vmatprep.subr.mxu0 0.0
        %393 = vmatpush2.msra.mxu0 0.0
        %394 = vmatprep.subr.mxu0 0.0
        %395 = vmatpush2.msra.mxu0 0.0
        %396 = vmatprep.subr.mxu0 0.0
        %397 = vmatpush2.msra.mxu0 0.0
        %398 = vmatprep.subr.mxu0 0.0
        %399 = vmatpush2.msra.mxu0 0.0
        %400 = vmatprep.subr.mxu0 0.0
        %401 = vmatpush2.msra.mxu0 0.0
        %402 = vmatprep.subr.mxu0 0.0
        %403 = vmatpush2.msra.mxu0 0.0
        %404 = vmatprep.subr.mxu0 0.0
        %405 = vmatpush2.msra.mxu0 0.0
        %406 = vmatprep.subr.mxu0 0.0
        %407 = vmatpush2.msra.mxu0 0.0
        %408 = vmatprep.subr.mxu0 0.0
        %409 = vmatpush2.msra.mxu0 0.0
        %410 = vmatprep.subr.mxu0 0.0
        %411 = vmatpush2.msra.mxu0 0.0
        %412 = vmatprep.subr.mxu0 0.0
        %413 = vmatpush2.msra.mxu0 0.0
        %414 = vmatprep.subr.mxu0 0.0
        %415 = vmatpush2.msra.mxu0 0.0
        %416 = vmatprep.subr.mxu0 0.0
        %417 = vmatpush2.msra.mxu0 0.0
        %418 = vmatprep.subr.mxu0 0.0
        %419 = vmatpush2.msra.mxu0 0.0
        %420 = vmatprep.subr.mxu0 0.0
        %421 = vmatpush2.msra.mxu0 0.0
        %422 = vmatprep.subr.mxu0 0.0
        %423 = vmatpush2.msra.mxu0 0.0
        %424 = vmatprep.mubr.f32.mxu0 0.0
        %425 = vmatmul.mubr.f32.gmra.mxu0 %v358
        %v426 = vpop.f32.mrf.mxu0
        %v427 = vadd.f32 0.0, %v426
        %v428 = vpop.f32.mrf.mxu0
        %429 = vdwg.mxu0
        %v430 = vld [vmem:[#allocation7] sm:$0xff]
        %v431 = vld [vmem:[#allocation7 + $0x8] sm:$0xff]
        %432 = vmatprep.subr.mxu0 0.0
        %433 = vmatpush1.msra.mxu0 0.0
        %434 = vmatprep.subr.mxu0 0.0
        %435 = vmatpush1.msra.mxu0 0.0
        %436 = vmatprep.subr.mxu0 0.0
        %437 = vmatpush1.msra.mxu0 0.0
        %438 = vmatprep.subr.mxu0 0.0
        %439 = vmatpush1.msra.mxu0 0.0
        %440 = vmatprep.subr.mxu0 0.0
        %441 = vmatpush1.msra.mxu0 0.0
        %442 = vmatprep.subr.mxu0 0.0
        %443 = vmatpush1.msra.mxu0 0.0
        %444 = vmatprep.subr.mxu0 0.0
        %445 = vmatpush1.msra.mxu0 0.0
        %446 = vmatprep.subr.mxu0 0.0
        %447 = vmatpush1.msra.mxu0 0.0
        %448 = vmatprep.subr.mxu0 0.0
        %449 = vmatpush1.msra.mxu0 0.0
        %450 = vmatprep.subr.mxu0 0.0
        %451 = vmatpush1.msra.mxu0 0.0
        %452 = vmatprep.subr.mxu0 0.0
        %453 = vmatpush1.msra.mxu0 0.0
        %454 = vmatprep.subr.mxu0 0.0
        %455 = vmatpush1.msra.mxu0 0.0
        %456 = vmatprep.subr.mxu0 0.0
        %457 = vmatpush1.msra.mxu0 0.0
        %458 = vmatprep.subr.mxu0 0.0
        %459 = vmatpush1.msra.mxu0 0.0
        %460 = vmatprep.subr.mxu0 0.0
        %461 = vmatpush1.msra.mxu0 %v431
        %462 = vmatprep.subr.mxu0 0.0
        %463 = vmatpush1.msra.mxu0 %v430
        %464 = vmatprep.subr.mxu0 0.0
        %465 = vmatpush2.msra.mxu0 0.0
        %466 = vmatprep.subr.mxu0 0.0
        %467 = vmatpush2.msra.mxu0 0.0
        %468 = vmatprep.subr.mxu0 0.0
        %469 = vmatpush2.msra.mxu0 0.0
        %470 = vmatprep.subr.mxu0 0.0
        %471 = vmatpush2.msra.mxu0 0.0
        %472 = vmatprep.subr.mxu0 0.0
        %473 = vmatpush2.msra.mxu0 0.0
        %474 = vmatprep.subr.mxu0 0.0
        %475 = vmatpush2.msra.mxu0 0.0
        %476 = vmatprep.subr.mxu0 0.0
        %477 = vmatpush2.msra.mxu0 0.0
        %478 = vmatprep.subr.mxu0 0.0
        %479 = vmatpush2.msra.mxu0 0.0
        %480 = vmatprep.subr.mxu0 0.0
        %481 = vmatpush2.msra.mxu0 0.0
        %482 = vmatprep.subr.mxu0 0.0
        %483 = vmatpush2.msra.mxu0 0.0
        %484 = vmatprep.subr.mxu0 0.0
        %485 = vmatpush2.msra.mxu0 0.0
        %486 = vmatprep.subr.mxu0 0.0
        %487 = vmatpush2.msra.mxu0 0.0
        %488 = vmatprep.subr.mxu0 0.0
        %489 = vmatpush2.msra.mxu0 0.0
        %490 = vmatprep.subr.mxu0 0.0
        %491 = vmatpush2.msra.mxu0 0.0
        %492 = vmatprep.subr.mxu0 0.0
        %493 = vmatpush2.msra.mxu0 0.0
        %494 = vmatprep.subr.mxu0 0.0
        %495 = vmatpush2.msra.mxu0 0.0
        %496 = vmatprep.mubr.f32.mxu0 0.0
        %497 = vmatmul.mubr.f32.gmra.mxu0 %v358
        %v498 = vpop.f32.mrf.mxu0
        %v499 = vadd.f32 0.0, %v498
        %v500 = vpop.f32.mrf.mxu0
        %501 = vdwg.mxu0
        %v502 = vld [vmem:[%s345] sm:$0x1]
        %v504 = vlaneseq
        %v505 = vshrl.u32 %v504, 7
        %v506 = vsub.s32 0, %v505
        %v507 = vrot.slane %v502, %v506
        %v509 = vadd.f32 %v427, %v507
        %v510 = vld [vmem:[%s348] sm:$0x1]
        %v512 = vlaneseq
        %v513 = vshrl.u32 %v512, 7
        %v514 = vsub.s32 0, %v513
        %v515 = vrot.slane %v510, %v514
        %v517 = vadd.f32 %v499, %v515
        %v518 = vtanh.pop %v509
        %v519 = vmul.f32 %v517, 0.5
        %v520 = vtanh.pop %v519
        %v521 = vadd.f32 %v520, 1.0
        %v522 = vmul.f32 %v521, 0.5
        %v523 = vmul.f32 %v518, %v522
        %v524 = vld [vmem:[%s5] sm:$0x1]
        %v526 = vlaneseq
        %v527 = vshrl.u32 %v526, 7
        %v528 = vsub.s32 0, %v527
        %v529 = vrot.slane %v524, %v528
        %v531 = vmul.f32 %v523, %v529
        %vm532 = vcmask 261120
        %v533 = vsel %vm532, %v531, 0.0
        %534 = vadd.xlane.f32.xlu0 %v533
        %v535 = vpop.xlane.xlu0 %534
        %v536 = vld [vmem:[#allocation2] sm:$0x1]
        %v538 = vlaneseq
        %v539 = vshrl.u32 %v538, 7
        %v540 = vsub.s32 0, %v539
        %v541 = vrot.slane %v536, %v540
        %v543 = vadd.f32 %v535, %v541
        %vm544 = vcmask 7168
        %v545 = vsel %vm544, %v543, -inf
        %v546 = vrot.slane %v545, 4
        %v547 = vmax.f32 %v545, %v546
        %v548 = vrot.slane %v547, 2
        %v549 = vmax.f32 %v547, %v548
        %v550 = vrot.slane %v549, 1
        %v551 = vmax.f32 %v549, %v550
        %v552 = vsub.f32 %v543, %v551
        %v553 = vmul.f32 %v552, 1.442695
        %v554 = vpow.pop %v553
        %v555 = vsel %vm544, %v554, 0.0
        %v556 = vrot.slane %v555, 4
        %v557 = vadd.f32 %v555, %v556
        %v558 = vrot.slane %v557, 2
        %v559 = vadd.f32 %v557, %v558
        %v560 = vrot.slane %v559, 1
        %v561 = vadd.f32 %v559, %v560
        %v562 = vrcp.pop %v561
        %v563 = vmul.f32 %v554, %v562
        %564 = vst.msk [vmem:[%s352] sm:$0xff] %vm544, %v563
        %p565 = scmp.lt.s32.totalorder %s24, 1
        %s566 = scalar_select %p565, %s24, 1
        %s567 = smul.addr %s566, 8
        %s568 = scalar_lea.vmem %s7, %s567
        // Predicated region
        $region61: #{tpu_custom_call.1} parent=47 // pred_check
          %p569 = pneg %p204
        $region62: #{tpu_custom_call.1} parent=47 // pred_check_branch
          %571 = sbr.rel (%p569) target = $region64
        $region63: #{tpu_custom_call.1} parent=47 // pred_region
          _
        $region64: #{tpu_custom_call.1} parent=47 // pred_fallthru
          _
      $region48: #{tpu_custom_call.1} parent=5 // pred_fallthru
        _
      %p572 = scmp.le.s32.totalorder 2, %s19
      // Predicated region
      $region65: #{tpu_custom_call.1} parent=5 // pred_check
        %p573 = pneg %p572
      $region66: #{tpu_custom_call.1} parent=5 // pred_check_branch
        %575 = sbr.rel (%p573) target = $region68
      $region67: #{tpu_custom_call.1} parent=5 // pred_region
        %s576 = ssub.s32 %s19, 2
        // Predicated region
        $region69: #{tpu_custom_call.1} parent=67 // pred_check
          %p577 = pneg %p210
        $region70: #{tpu_custom_call.1} parent=67 // pred_check_branch
          %579 = sbr.rel (%p577) target = $region72
        $region71: #{tpu_custom_call.1} parent=67 // pred_region
          %p580 = scmp.lt.s32.totalorder %s25, 1
          %s581 = scalar_select %p580, %s25, 1
          %s582 = smul.addr %s581, 8
          %s583 = scalar_lea.vmem %s7, %s582
        $region72: #{tpu_custom_call.1} parent=67 // pred_fallthru
          _
      $region68: #{tpu_custom_call.1} parent=5 // pred_fallthru
        _
    $region6: #{tpu_custom_call.1} parent=1 // loop_footer
      %s23 = sadd.s32 1, %s19
    $region7: #{tpu_custom_call.1} parent=1 // loop_footer_branch
      %18 = sbr.rel target = $region3
    $region8: #{tpu_custom_call.1} parent=1 // loop_exit
      _
    %584 = vsyncpa [#allocation4], 1
    %s585 = scalar_lea.sflag [#allocation4], 1
    %586 = vsyncpa %s585, 1
    %587 = vsyncpa [#allocation6], 1

</llo_original>
